<compile_context>
chip_gen: v6e
topology: v6e:2x2x1
jax: 0.10.0
libtpu: 0.0.40
codegen_flags: <defaults>
</compile_context>

<pallas_src>
import functools

import jax
import jax.numpy as jnp
import numpy as np
from jax.experimental import pallas as pl
from jax.experimental.pallas import tpu as pltpu

_PROJ_W = 128   # lane-padded width of the fused [early_stop | value] projection


def _round_up(x, m):
    return ((x + m - 1) // m) * m


# ---------------------------------------------------------------------------
# Pallas kernel: fully fused forward hot path
# ---------------------------------------------------------------------------
def _reticl_fused_kernel(eos_col,                       # static: column index of eos (= N)
                         lat_ref, bil_ref, allT_ref, esvw_ref, esvb_ref,
                         mids_ref, pos0_ref, bias_ref,
                         act_ref, val_ref,
                         q_sc, eos_sc):
    n = pl.program_id(1)
    tm, tn = act_ref.shape
    L = mids_ref.shape[1]

    # Per M-tile work: query vectors + fused (eos, value) projection.  Done once
    # at the first N tile, reused (VMEM scratch / resident output block) afterwards.
    @pl.when(n == 0)
    def _():
        lat = lat_ref[...]                                                   # [TM, H] bf16
        q = jnp.dot(lat, bil_ref[...], preferred_element_type=jnp.float32)   # [TM, E] f32
        q_sc[...] = q.astype(q_sc.dtype)
        esv = jnp.dot(lat, esvw_ref[...], preferred_element_type=jnp.float32)
        esv = esv + esvb_ref[...]                     # [TM, PROJ_W]; cols 0/1 meaningful
        eos_sc[...] = esv[:, 0:1] + pos0_ref[...]     # early-stop act, -inf at pos 0
        val_ref[...] = esv[:, 1:2]                    # value-fn estimate

    # activations = query @ all_example_encodings.T (+ scalar bias)
    act = jnp.dot(q_sc[...], allT_ref[...], preferred_element_type=jnp.float32)
    act = act + bias_ref[0]

    # mask_prev_examples: row r is masked at corpus index j iff j appears in
    # masked_ids[r, :] (sentinel -1 never matches a lane index).
    lane = jax.lax.broadcasted_iota(jnp.int32, (tm, tn), 1) + n * tn
    mids = mids_ref[...]                                                     # [TM, L] int32
    masked = mids[:, 0:1] == lane
    for u in range(1, L):                                                    # L is small/static
        masked = masked | (mids[:, u:u + 1] == lane)
    act = jnp.where(masked, -jnp.inf, act)

    # fused concat: write the eos activation into column `eos_col` (= N)
    act = jnp.where(lane == eos_col, eos_sc[...], act)
    act_ref[...] = act


def _vmem_limit_bytes(tm, tn, H, E, L):
    bf16, f32, i32 = 2, 4, 4
    need = 0
    need += 2 * tm * H * bf16                       # latent tile (double-buffered)
    need += 2 * H * E * bf16                        # bilinear (resident)
    need += 2 * E * tn * bf16                       # corpus tile
    need += 2 * (H * _PROJ_W * bf16 + _PROJ_W * f32)  # fused proj weight + bias
    need += 2 * (tm * L * i32 + tm * f32)           # masked ids + pos0 column
    need += 2 * tm * tn * f32                       # activation output tile
    need += 2 * tm * f32                            # value output tile
    need += tm * E * bf16 + tm * f32                # scratch (q, eos)
    return int(min(max(need * 3 // 2 + (4 << 20), 16 << 20), 64 << 20))


def reticl_hot_path(latent2d, bilinear, all_example_encodings,
                    esv_w, esv_b, bias, masked_ids, pos0, *, tm=None, tn=None):
    """latent2d [M,H]; bilinear [H,E]; all_example_encodings [N,E]; esv_w [H,2];
    esv_b [2]; bias [1]; masked_ids [M,L] int32 (-1 sentinel); pos0 [M,1] f32.
    Returns (activations [M, N+1] f32 with mask & eos column fused, values [M] f32)."""
    M, H = latent2d.shape
    N, E = all_example_encodings.shape
    L = masked_ids.shape[1]
    n_cols = N + 1                                   # activations + fused eos column

    if tm is None:
        tm = min(128, _round_up(M, 8))               # 128-row MXU tiles when M allows
    if tn is None:
        tn = 512 if n_cols >= 512 else _round_up(n_cols, 128)   # lane-dense output tiles
    M_pad = _round_up(M, tm)
    N_pad = _round_up(n_cols, tn)

    # bf16 MXU inputs (f32 accumulation in-kernel); pad to tile multiples.
    lat_p = jnp.zeros((M_pad, H), jnp.bfloat16).at[:M, :].set(latent2d.astype(jnp.bfloat16))
    allT_p = jnp.zeros((E, N_pad), jnp.bfloat16).at[:, :N].set(
        all_example_encodings.T.astype(jnp.bfloat16))
    mids_p = jnp.full((M_pad, L), -1, jnp.int32).at[:M, :].set(masked_ids)
    pos0_p = jnp.zeros((M_pad, 1), jnp.float32).at[:M, :].set(pos0)
    bil = bilinear.astype(jnp.bfloat16)
    # lane-padded fused [early_stop | value] projection (cols 0/1 live, rest zero)
    esvw_p = jnp.zeros((H, _PROJ_W), jnp.bfloat16).at[:, :2].set(esv_w.astype(jnp.bfloat16))
    esvb_p = jnp.zeros((1, _PROJ_W), jnp.float32).at[0, :2].set(
        esv_b.astype(jnp.float32).reshape(2))
    bias = bias.astype(jnp.float32).reshape(1)

    grid = (M_pad // tm, N_pad // tn)
    smem_spec = pl.BlockSpec(memory_space=pltpu.MemorySpace.SMEM)

    act, val = pl.pallas_call(
        functools.partial(_reticl_fused_kernel, N),
        out_shape=(jax.ShapeDtypeStruct((M_pad, N_pad), jnp.float32),
                   jax.ShapeDtypeStruct((M_pad, 1), jnp.float32)),
        grid=grid,
        in_specs=[
            pl.BlockSpec((tm, H), lambda i, n: (i, 0)),        # latent tile
            pl.BlockSpec((H, E), lambda i, n: (0, 0)),         # bilinear (resident)
            pl.BlockSpec((E, tn), lambda i, n: (0, n)),        # corpus tile (N-tiled)
            pl.BlockSpec((H, _PROJ_W), lambda i, n: (0, 0)),   # fused [es | value] weight
            pl.BlockSpec((1, _PROJ_W), lambda i, n: (0, 0)),   # fused proj biases
            pl.BlockSpec((tm, L), lambda i, n: (i, 0)),        # masked corpus ids per row
            pl.BlockSpec((tm, 1), lambda i, n: (i, 0)),        # -inf-at-pos-0 offset
            smem_spec,                                         # scalar activation bias
        ],
        out_specs=(
            pl.BlockSpec((tm, tn), lambda i, n: (i, n)),       # [act | eos] lane-dense tiles
            pl.BlockSpec((tm, 1), lambda i, n: (i, 0)),        # value estimates (resident)
        ),
        scratch_shapes=[pltpu.VMEM((tm, E), jnp.bfloat16),     # query vectors, reused over n
                        pltpu.VMEM((tm, 1), jnp.float32)],     # eos activation column
        compiler_params=pltpu.CompilerParams(
            dimension_semantics=("parallel", "arbitrary"),
            vmem_limit_bytes=_vmem_limit_bytes(tm, tn, H, E, L)),
    )(lat_p, bil, allT_p, esvw_p, esvb_p, mids_p, pos0_p, bias)

    return act[:M, :n_cols], val[:M, 0]


# ---------------------------------------------------------------------------
# get_latent_states — abstract in RetICLBase.
# TODO(synk): get_latent_states is @abstractmethod in RetICLBase; a simple
# deterministic linear placeholder is used here (h_0 from the current sample,
# h_t from current sample + example t-1), matching the [B, L+1, H] contract.
# ---------------------------------------------------------------------------
def get_latent_states(cur, ex, w_c, w_e):
    h_cur = jnp.tanh(cur @ w_c)                                   # [B, H]
    h_ex = jnp.tanh(cur[:, None, :] @ w_c + ex @ w_e)             # [B, L, H]
    return jnp.concatenate([h_cur[:, None, :], h_ex], axis=1)     # [B, L+1, H]


# ---------------------------------------------------------------------------
# Full forward (PG path, num_critics == 0)
# ---------------------------------------------------------------------------
@jax.jit
def reticl_forward(params, current_sample_encodings, example_encodings,
                   policy_example_indices, all_example_encodings, seq_len):
    B, L, E = example_encodings.shape

    # latent states, drop last position; dropout is identity in eval mode
    latent = get_latent_states(current_sample_encodings, example_encodings,
                               params["w_c"], params["w_e"])[:, :-1]        # [B, L, H]
    H = latent.shape[-1]
    latent2d = latent.reshape(B * L, H)

    # Compact mask_prev_examples representation (O(B*L*L) ints, no [B,L,N] mask):
    # row r=(b,pos) must be -inf at corpus id policy_idx[b,u] iff u < pos < seq_len[b].
    pos = jnp.arange(L)
    uu = jnp.arange(L)
    valid = (uu[None, None, :] < pos[None, :, None]) & \
            (pos[None, :, None] < seq_len[:, None, None])                   # [B, Lpos, Lu]
    masked_ids = jnp.where(valid, policy_example_indices[:, None, :], -1)
    masked_ids = masked_ids.reshape(B * L, L).astype(jnp.int32)

    # eos_activations[:, 0] = -inf  -> additive per-row offset for the eos column
    pos0 = jnp.where(pos == 0, -jnp.inf, 0.0).astype(jnp.float32)           # [L]
    pos0 = jnp.tile(pos0, (B,)).reshape(B * L, 1)

    # fuse early_stop_proj and value_fn_estimator into one (H, 2) projection
    esv_w = jnp.concatenate([params["es_w"], params["v_w"]], axis=1)        # [H, 2]
    esv_b = jnp.concatenate([params["es_b"], params["v_b"]])                # [2]

    activations, value_estimates = reticl_hot_path(
        latent2d, params["bilinear"], all_example_encodings,
        esv_w, esv_b, params["bias"], masked_ids, pos0)

    # TODO(synk): the `max_seq_len > num_examples` branch is a no-op because
    # num_examples == L in this configuration.
    return activations, value_estimates                                     # [B*L, N+1], [B*L]


def init_params(key, hidden_size, emb_size):
    k1, k2, k3, k4 = jax.random.split(key, 4)
    bound = 1.0 / (hidden_size ** 0.5)
    return {
        "bilinear": jax.random.uniform(k1, (hidden_size, emb_size), jnp.float32,
                                       -bound, bound),
        "bias": jnp.zeros((1,), jnp.float32),
        # early_stop_proj: Linear(H, 1), bias init to 1 -> store weight.T [H, 1]
        "es_w": jax.random.uniform(k2, (hidden_size, 1), jnp.float32, -bound, bound),
        "es_b": jnp.ones((1,), jnp.float32),
        # value_fn_estimator: Linear(H, 1)
        "v_w": jax.random.uniform(k3, (hidden_size, 1), jnp.float32, -bound, bound),
        "v_b": jax.random.uniform(k4, (1,), jnp.float32, -bound, bound),
    }


if __name__ == "__main__":
    B, L, E, H, N = 2, 8, 64, 32, 16   # batch, max_seq_len(=num_examples), emb, hidden, corpus

    key = jax.random.PRNGKey(0)
    kp, kc, ke, k1, k2, k3, k4 = jax.random.split(key, 7)

    params = init_params(kp, H, E)
    params["w_c"] = jax.random.normal(kc, (E, H), jnp.float32) * 0.05
    params["w_e"] = jax.random.normal(ke, (E, H), jnp.float32) * 0.05

    current_sample_encodings = jax.random.normal(k1, (B, E), jnp.float32)
    example_encodings = jax.random.normal(k2, (B, L, E), jnp.float32)
    all_example_encodings = jax.random.normal(k3, (N, E), jnp.float32)
    policy_example_indices = jax.random.randint(k4, (B, L), 0, N)
    seq_len = jnp.array([L, L - 3], dtype=jnp.int32)

    activations, value_estimates = reticl_forward(
        params, current_sample_encodings, example_encodings,
        policy_example_indices, all_example_encodings, seq_len)
    jax.block_until_ready((activations, value_estimates))

    # ---- pure f32 reference mirroring the PyTorch forward ----
    latent_ref = np.asarray(get_latent_states(current_sample_encodings, example_encodings,
                                              params["w_c"], params["w_e"])[:, :-1],
                            dtype=np.float32)                               # [B, L, H]
    q_ref = latent_ref @ np.asarray(params["bilinear"])
    act_ref = q_ref @ np.asarray(all_example_encodings).T + float(params["bias"][0])
    p_idx = np.asarray(policy_example_indices)
    sl = np.asarray(seq_len)
    for b in range(B):
        for u in range(sl[b] - 1):
            for nn in range(u + 1, sl[b]):
                act_ref[b, nn, p_idx[b, u]] = -np.inf
    eos_ref = latent_ref @ np.asarray(params["es_w"]) + float(params["es_b"][0])
    eos_ref[:, 0] = -np.inf
    act_full_ref = np.concatenate([act_ref, eos_ref], axis=2).reshape(B * L, N + 1)
    val_ref = (latent_ref @ np.asarray(params["v_w"]) + float(params["v_b"][0])).reshape(-1)

    act_k = np.asarray(activations)
    val_k = np.asarray(value_estimates)

    assert act_k.shape == (B * L, N + 1)
    assert val_k.shape == (B * L,)
    # exact -inf placement (mask_prev_examples + eos position-0 masking)
    assert np.array_equal(np.isneginf(act_k), np.isneginf(act_full_ref)), "mask mismatch"
    finite = np.isfinite(act_full_ref)
    assert np.allclose(act_k[finite], act_full_ref[finite], atol=0.25, rtol=0.05), \
        "activation mismatch"
    assert np.allclose(val_k, val_ref, atol=0.05, rtol=0.05), "value mismatch"
    print("KERNEL_OK")
</pallas_src>

<mosaic_0001>
module attributes {stable_mosaic.version = 11 : i64} {
  func.func @_reticl_fused_kernel(%arg0: i32, %arg1: i32, %arg2: memref<16x32xbf16, #tpu.memory_space<vmem>>, %arg3: memref<32x64xbf16, #tpu.memory_space<vmem>>, %arg4: memref<64x128xbf16, #tpu.memory_space<vmem>>, %arg5: memref<32x128xbf16, #tpu.memory_space<vmem>>, %arg6: memref<1x128xf32, #tpu.memory_space<vmem>>, %arg7: memref<16x8xi32, #tpu.memory_space<vmem>>, %arg8: memref<16x1xf32, #tpu.memory_space<vmem>>, %arg9: memref<1xf32, #tpu.memory_space<smem>>, %arg10: memref<16x128xf32, #tpu.memory_space<vmem>>, %arg11: memref<16x1xf32, #tpu.memory_space<vmem>>, %arg12: memref<16x64xbf16, #tpu.memory_space<vmem>>, %arg13: memref<16x1xf32, #tpu.memory_space<vmem>>) attributes {dimension_semantics = [#tpu.dimension_semantics<parallel>, #tpu.dimension_semantics<arbitrary>], iteration_bounds = array<i64: 1, 1>, scalar_prefetch = 0 : i64, scratch_operands = 2 : i64, tpu.core_type = #tpu.core_type<tc>, window_params = [{transform_indices = @transform_0, window_bounds = array<i64: 16, 32>}, {pipeline_mode = #tpu.pipeline_mode<synchronous>, transform_indices = @transform_1, window_bounds = array<i64: 32, 64>}, {transform_indices = @transform_2, window_bounds = array<i64: 64, 128>}, {pipeline_mode = #tpu.pipeline_mode<synchronous>, transform_indices = @transform_3, window_bounds = array<i64: 32, 128>}, {pipeline_mode = #tpu.pipeline_mode<synchronous>, transform_indices = @transform_4, window_bounds = array<i64: 1, 128>}, {transform_indices = @transform_5, window_bounds = array<i64: 16, 8>}, {transform_indices = @transform_6, window_bounds = array<i64: 16, 1>}, {transform_indices = @transform_7, window_bounds = array<i64: 1>}, {transform_indices = @transform_8, window_bounds = array<i64: 16, 128>}, {transform_indices = @transform_9, window_bounds = array<i64: 16, 1>}]} {
    %c0_i32 = arith.constant 0 : i32
    %0 = arith.cmpi eq, %arg1, %c0_i32 : i32
    %1 = arith.extui %0 : i1 to i32
    %c0_i32_0 = arith.constant 0 : i32
    %2 = arith.cmpi ne, %1, %c0_i32_0 : i32
    scf.if %2 {
      %c0_12 = arith.constant 0 : index
      %c0_13 = arith.constant 0 : index
      %54 = vector.load %arg2[%c0_12, %c0_13] : memref<16x32xbf16, #tpu.memory_space<vmem>>, vector<16x32xbf16>
      %c0_14 = arith.constant 0 : index
      %c0_15 = arith.constant 0 : index
      %55 = vector.load %arg3[%c0_14, %c0_15] : memref<32x64xbf16, #tpu.memory_space<vmem>>, vector<32x64xbf16>
      %cst_16 = arith.constant dense<0.000000e+00> : vector<16x64xf32>
      %56 = tpu.matmul %54, %55, %cst_16 {dimension_numbers = #tpu.dot_dimension_numbers<[1], [0], [0], [1], [0, 0, 1, 1], [], []>} : vector<16x32xbf16>, vector<32x64xbf16>, vector<16x64xf32> -> vector<16x64xf32>
      %57 = arith.truncf %56 : vector<16x64xf32> to vector<16x64xbf16>
      %c0_17 = arith.constant 0 : index
      %c0_18 = arith.constant 0 : index
      %58 = vector.load %arg12[%c0_17, %c0_18] : memref<16x64xbf16, #tpu.memory_space<vmem>>, vector<16x64xbf16>
      tpu.vector_store %arg12[%c0_17, %c0_18], %57 {strides = array<i32>} : memref<16x64xbf16, #tpu.memory_space<vmem>>, vector<16x64xbf16>,
      %c0_19 = arith.constant 0 : index
      %c0_20 = arith.constant 0 : index
      %59 = vector.load %arg5[%c0_19, %c0_20] : memref<32x128xbf16, #tpu.memory_space<vmem>>, vector<32x128xbf16>
      %cst_21 = arith.constant dense<0.000000e+00> : vector<16x128xf32>
      %60 = tpu.matmul %54, %59, %cst_21 {dimension_numbers = #tpu.dot_dimension_numbers<[1], [0], [0], [1], [0, 0, 1, 1], [], []>} : vector<16x32xbf16>, vector<32x128xbf16>, vector<16x128xf32> -> vector<16x128xf32>
      %c0_22 = arith.constant 0 : index
      %c0_23 = arith.constant 0 : index
      %61 = vector.load %arg6[%c0_22, %c0_23] : memref<1x128xf32, #tpu.memory_space<vmem>>, vector<1x128xf32>
      %62 = vector.broadcast %61 : vector<1x128xf32> to vector<16x128xf32>
      %63 = arith.addf %60, %62 : vector<16x128xf32>
      %64 = vector.extract_strided_slice %63 {offsets = [0, 0], sizes = [16, 1], strides = [1, 1]} : vector<16x128xf32> to vector<16x1xf32>
      %c0_24 = arith.constant 0 : index
      %c0_25 = arith.constant 0 : index
      %65 = vector.load %arg8[%c0_24, %c0_25] : memref<16x1xf32, #tpu.memory_space<vmem>>, vector<16x1xf32>
      %66 = arith.addf %64, %65 : vector<16x1xf32>
      %c0_26 = arith.constant 0 : index
      %c0_27 = arith.constant 0 : index
      %67 = vector.load %arg13[%c0_26, %c0_27] : memref<16x1xf32, #tpu.memory_space<vmem>>, vector<16x1xf32>
      tpu.vector_store %arg13[%c0_26, %c0_27], %66 {strides = array<i32>} : memref<16x1xf32, #tpu.memory_space<vmem>>, vector<16x1xf32>,
      %68 = vector.extract_strided_slice %63 {offsets = [0, 1], sizes = [16, 1], strides = [1, 1]} : vector<16x128xf32> to vector<16x1xf32>
      %c0_28 = arith.constant 0 : index
      %c0_29 = arith.constant 0 : index
      %69 = vector.load %arg11[%c0_28, %c0_29] : memref<16x1xf32, #tpu.memory_space<vmem>>, vector<16x1xf32>
      tpu.vector_store %arg11[%c0_28, %c0_29], %68 {strides = array<i32>} : memref<16x1xf32, #tpu.memory_space<vmem>>, vector<16x1xf32>,
    } else {
    }
    %c0 = arith.constant 0 : index
    %c0_1 = arith.constant 0 : index
    %3 = vector.load %arg12[%c0, %c0_1] : memref<16x64xbf16, #tpu.memory_space<vmem>>, vector<16x64xbf16>
    %c0_2 = arith.constant 0 : index
    %c0_3 = arith.constant 0 : index
    %4 = vector.load %arg4[%c0_2, %c0_3] : memref<64x128xbf16, #tpu.memory_space<vmem>>, vector<64x128xbf16>
    %cst = arith.constant dense<0.000000e+00> : vector<16x128xf32>
    %5 = tpu.matmul %3, %4, %cst {dimension_numbers = #tpu.dot_dimension_numbers<[1], [0], [0], [1], [0, 0, 1, 1], [], []>} : vector<16x64xbf16>, vector<64x128xbf16>, vector<16x128xf32> -> vector<16x128xf32>
    %c0_4 = arith.constant 0 : index
    %6 = memref.load %arg9[%c0_4] : memref<1xf32, #tpu.memory_space<smem>>
    %7 = vector.broadcast %6 : f32 to vector<16x128xf32>
    %8 = arith.addf %5, %7 : vector<16x128xf32>
    %9 = tpu.iota {dimensions = array<i32: 1>} : vector<16x128xi32>
    %c128_i32 = arith.constant 128 : i32
    %10 = arith.muli %arg1, %c128_i32 : i32
    %11 = vector.broadcast %10 : i32 to vector<16x128xi32>
    %12 = arith.addi %9, %11 : vector<16x128xi32>
    %c0_5 = arith.constant 0 : index
    %c0_6 = arith.constant 0 : index
    %13 = vector.load %arg7[%c0_5, %c0_6] : memref<16x8xi32, #tpu.memory_space<vmem>>, vector<16x8xi32>
    %14 = vector.extract_strided_slice %13 {offsets = [0, 0], sizes = [16, 1], strides = [1, 1]} : vector<16x8xi32> to vector<16x1xi32>
    %15 = vector.broadcast %14 : vector<16x1xi32> to vector<16x128xi32>
    %16 = arith.cmpi eq, %15, %12 : vector<16x128xi32>
    %17 = vector.extract_strided_slice %13 {offsets = [0, 1], sizes = [16, 1], strides = [1, 1]} : vector<16x8xi32> to vector<16x1xi32>
    %18 = vector.broadcast %17 : vector<16x1xi32> to vector<16x128xi32>
    %19 = arith.cmpi eq, %18, %12 : vector<16x128xi32>
    %20 = arith.ori %16, %19 : vector<16x128xi1>
    %21 = vector.extract_strided_slice %13 {offsets = [0, 2], sizes = [16, 1], strides = [1, 1]} : vector<16x8xi32> to vector<16x1xi32>
    %22 = vector.broadcast %21 : vector<16x1xi32> to vector<16x128xi32>
    %23 = arith.cmpi eq, %22, %12 : vector<16x128xi32>
    %24 = arith.ori %20, %23 : vector<16x128xi1>
    %25 = vector.extract_strided_slice %13 {offsets = [0, 3], sizes = [16, 1], strides = [1, 1]} : vector<16x8xi32> to vector<16x1xi32>
    %26 = vector.broadcast %25 : vector<16x1xi32> to vector<16x128xi32>
    %27 = arith.cmpi eq, %26, %12 : vector<16x128xi32>
    %28 = arith.ori %24, %27 : vector<16x128xi1>
    %29 = vector.extract_strided_slice %13 {offsets = [0, 4], sizes = [16, 1], strides = [1, 1]} : vector<16x8xi32> to vector<16x1xi32>
    %30 = vector.broadcast %29 : vector<16x1xi32> to vector<16x128xi32>
    %31 = arith.cmpi eq, %30, %12 : vector<16x128xi32>
    %32 = arith.ori %28, %31 : vector<16x128xi1>
    %33 = vector.extract_strided_slice %13 {offsets = [0, 5], sizes = [16, 1], strides = [1, 1]} : vector<16x8xi32> to vector<16x1xi32>
    %34 = vector.broadcast %33 : vector<16x1xi32> to vector<16x128xi32>
    %35 = arith.cmpi eq, %34, %12 : vector<16x128xi32>
    %36 = arith.ori %32, %35 : vector<16x128xi1>
    %37 = vector.extract_strided_slice %13 {offsets = [0, 6], sizes = [16, 1], strides = [1, 1]} : vector<16x8xi32> to vector<16x1xi32>
    %38 = vector.broadcast %37 : vector<16x1xi32> to vector<16x128xi32>
    %39 = arith.cmpi eq, %38, %12 : vector<16x128xi32>
    %40 = arith.ori %36, %39 : vector<16x128xi1>
    %41 = vector.extract_strided_slice %13 {offsets = [0, 7], sizes = [16, 1], strides = [1, 1]} : vector<16x8xi32> to vector<16x1xi32>
    %42 = vector.broadcast %41 : vector<16x1xi32> to vector<16x128xi32>
    %43 = arith.cmpi eq, %42, %12 : vector<16x128xi32>
    %44 = arith.ori %40, %43 : vector<16x128xi1>
    %cst_7 = arith.constant 0xFF800000 : f32
    %45 = vector.broadcast %cst_7 : f32 to vector<16x128xf32>
    %46 = arith.select %44, %45, %8 : vector<16x128xi1>, vector<16x128xf32>
    %c16_i32 = arith.constant 16 : i32
    %47 = vector.broadcast %c16_i32 : i32 to vector<16x128xi32>
    %48 = arith.cmpi eq, %12, %47 : vector<16x128xi32>
    %c0_8 = arith.constant 0 : index
    %c0_9 = arith.constant 0 : index
    %49 = vector.load %arg13[%c0_8, %c0_9] : memref<16x1xf32, #tpu.memory_space<vmem>>, vector<16x1xf32>
    %50 = vector.shape_cast %49 : vector<16x1xf32> to vector<16x1xf32>
    %51 = vector.broadcast %50 : vector<16x1xf32> to vector<16x128xf32>
    %52 = arith.select %48, %51, %46 : vector<16x128xi1>, vector<16x128xf32>
    %c0_10 = arith.constant 0 : index
    %c0_11 = arith.constant 0 : index
    %53 = vector.load %arg10[%c0_10, %c0_11] : memref<16x128xf32, #tpu.memory_space<vmem>>, vector<16x128xf32>
    tpu.vector_store %arg10[%c0_10, %c0_11], %52 {strides = array<i32>} : memref<16x128xf32, #tpu.memory_space<vmem>>, vector<16x128xf32>,
    return
  }
  func.func @transform_0(%arg0: i32, %arg1: i32) -> (i32, i32) {
    %c0_i32 = arith.constant 0 : i32
    %c0_i32_0 = arith.constant 0 : i32
    return %arg0, %c0_i32 : i32, i32
  }
  func.func @transform_1(%arg0: i32, %arg1: i32) -> (i32, i32) {
    %c0_i32 = arith.constant 0 : i32
    %c0_i32_0 = arith.constant 0 : i32
    %c0_i32_1 = arith.constant 0 : i32
    return %c0_i32, %c0_i32_0 : i32, i32
  }
  func.func @transform_2(%arg0: i32, %arg1: i32) -> (i32, i32) {
    %c0_i32 = arith.constant 0 : i32
    %c0_i32_0 = arith.constant 0 : i32
    return %c0_i32, %arg1 : i32, i32
  }
  func.func @transform_3(%arg0: i32, %arg1: i32) -> (i32, i32) {
    %c0_i32 = arith.constant 0 : i32
    %c0_i32_0 = arith.constant 0 : i32
    %c0_i32_1 = arith.constant 0 : i32
    return %c0_i32, %c0_i32_0 : i32, i32
  }
  func.func @transform_4(%arg0: i32, %arg1: i32) -> (i32, i32) {
    %c0_i32 = arith.constant 0 : i32
    %c0_i32_0 = arith.constant 0 : i32
    %c0_i32_1 = arith.constant 0 : i32
    return %c0_i32, %c0_i32_0 : i32, i32
  }
  func.func @transform_5(%arg0: i32, %arg1: i32) -> (i32, i32) {
    %c0_i32 = arith.constant 0 : i32
    %c0_i32_0 = arith.constant 0 : i32
    return %arg0, %c0_i32 : i32, i32
  }
  func.func @transform_6(%arg0: i32, %arg1: i32) -> (i32, i32) {
    %c0_i32 = arith.constant 0 : i32
    %c0_i32_0 = arith.constant 0 : i32
    return %arg0, %c0_i32 : i32, i32
  }
  func.func @transform_7(%arg0: i32, %arg1: i32) -> i32 {
    %c0_i32 = arith.constant 0 : i32
    %c0_i32_0 = arith.constant 0 : i32
    return %c0_i32 : i32
  }
  func.func @transform_8(%arg0: i32, %arg1: i32) -> (i32, i32) {
    %c0_i32 = arith.constant 0 : i32
    return %arg0, %arg1 : i32, i32
  }
  func.func @transform_9(%arg0: i32, %arg1: i32) -> (i32, i32) {
    %c0_i32 = arith.constant 0 : i32
    %c0_i32_0 = arith.constant 0 : i32
    return %arg0, %c0_i32 : i32, i32
  }
}

</mosaic_0001>

<llo_original>
// kernel: tile.8
$region0: #{tile.8}
  #allocation0 [shape = 's32[1]{0}', space=sflag, size = 0x4, scoped, tag = 'scoped memory for tile.8']
  %s0 = inlined_call_operand.vmem [shape: f32[8], index: 0, kind: input, shape index: {}]
  %s1 = inlined_call_operand.vmem [shape: f32[2,8], index: 1, kind: output, shape index: {}]
  // Predicated region
  $region2: #{tile.8} parent=0 // pred_check
    _
  $region3: #{tile.8} parent=0 // pred_check_branch
    %3 = sbr.rel (0) target = $region5
  $region4: #{tile.8} parent=0 // pred_region
    _
  $region5: #{tile.8} parent=0 // pred_fallthru
    _
  %v4 = vld [vmem:[%s0] ss:$0 sm:$0xff]
  %5 = vst [vmem:[%s1] sm:$0x3] %v4

// kernel: reticl_forward.1
$region0: #{reticl_forward.1}
  #allocation0 [shape = 'u32[]', space=smem, size = 0x4, offset = 0x4, fixed_abs, tag = 'smem constant byte address 0x4 - core index']
  #allocation1 [shape = 'u32[144,128]{1,0:T(1,128)}', space=vmem, size = 0x12000, scoped, tag = 'internal scratch']
  #allocation2 [shape = 'bf16[16,64]{1,0:T(8,128)(2,1)}', space=vmem, size = 0x1000, scoped, tag = 'scratch operand']
  #allocation3 [shape = 'f32[16,1]{1,0:T(8,128)}', space=vmem, size = 0x2000, scoped, tag = 'scratch operand']
  #allocation4 [shape = 'f32[1]{0:T(128)S(6)}', space=smem, size = 0x200, scoped, tag = 'scoped memory for reticl_forward.1']
  %s0 = inlined_call_operand.vmem [shape: bf16[16,32], index: 0, kind: input, shape index: {}]
  %s1 = inlined_call_operand.vmem [shape: bf16[32,64], index: 1, kind: input, shape index: {}]
  %s2 = inlined_call_operand.vmem [shape: bf16[64,128], index: 2, kind: input, shape index: {}]
  %s3 = inlined_call_operand.vmem [shape: bf16[32,128], index: 3, kind: input, shape index: {}]
  %s4 = inlined_call_operand.vmem [shape: f32[1,128], index: 4, kind: input, shape index: {}]
  %s5 = inlined_call_operand.vmem [shape: s32[16,8], index: 5, kind: input, shape index: {}]
  %s6 = inlined_call_operand.vmem [shape: f32[16,1], index: 6, kind: input, shape index: {}]
  %s7 = inlined_call_operand.<no memory space> [shape: f32[1], index: 7, kind: input, shape index: {}]
  %s8 = inlined_call_operand.hbm [shape: f32[16,128], index: 8, kind: output, shape index: {0}]
  %s9 = inlined_call_operand.vmem [shape: f32[16,1], index: 9, kind: output, shape index: {1}]
  %10 = xla_tuple %s8, %s9
  %s11 = sld [smem:[#allocation0]]
  $region54: #{reticl_forward.1} parent=0
    _
  %s13 = ssub.s32 1, %s11
  %s14 = scalar_select 0, %s13, %s11
  %15 = sst [smem:[#allocation4]] %s7
  $region1: #{reticl_forward.1} parent=0
    #allocation5 [shape = 'u8[8192]{0}', space=vmem, size = 0x2000, scoped, tag = 'output window, operand 0, single buffered']
    #allocation6 [shape = 's32[1]{0}', space=sflag, size = 0x4, scoped, tag = 'scoped memory for reticl_forward.1']
    %16 = vsyncpa [#allocation6], 0
    // Predicated region
    $region2: #{reticl_forward.1} parent=1 // pred_check
      _
    $region3: #{reticl_forward.1} parent=1 // pred_check_branch
      %18 = sbr.rel (0) target = $region5
    $region4: #{reticl_forward.1} parent=1 // pred_region
      _
    $region5: #{reticl_forward.1} parent=1 // pred_fallthru
      _
    // Predicated region
    $region6: #{reticl_forward.1} parent=1 // pred_check
      _
    $region7: #{reticl_forward.1} parent=1 // pred_check_branch
      %20 = sbr.rel (0) target = $region9
    $region8: #{reticl_forward.1} parent=1 // pred_region
      _
    $region9: #{reticl_forward.1} parent=1 // pred_fallthru
      _
    // Predicated region
    $region10: #{reticl_forward.1} parent=1 // pred_check
      _
    $region11: #{reticl_forward.1} parent=1 // pred_check_branch
      %22 = sbr.rel (0) target = $region13
    $region12: #{reticl_forward.1} parent=1 // pred_region
      _
    $region13: #{reticl_forward.1} parent=1 // pred_fallthru
      _
    // Predicated region
    $region14: #{reticl_forward.1} parent=1 // pred_check
      _
    $region15: #{reticl_forward.1} parent=1 // pred_check_branch
      %24 = sbr.rel (0) target = $region17
    $region16: #{reticl_forward.1} parent=1 // pred_region
      _
    $region17: #{reticl_forward.1} parent=1 // pred_fallthru
      _
    // Predicated region
    $region18: #{reticl_forward.1} parent=1 // pred_check
      _
    $region19: #{reticl_forward.1} parent=1 // pred_check_branch
      %26 = sbr.rel (0) target = $region21
    $region20: #{reticl_forward.1} parent=1 // pred_region
      _
    $region21: #{reticl_forward.1} parent=1 // pred_fallthru
      _
    // Predicated region
    $region22: #{reticl_forward.1} parent=1 // pred_check
      _
    $region23: #{reticl_forward.1} parent=1 // pred_check_branch
      %28 = sbr.rel (0) target = $region25
    $region24: #{reticl_forward.1} parent=1 // pred_region
      _
    $region25: #{reticl_forward.1} parent=1 // pred_fallthru
      _
    // Predicated region
    $region26: #{reticl_forward.1} parent=1 // pred_check
      _
    $region27: #{reticl_forward.1} parent=1 // pred_check_branch
      %30 = sbr.rel (0) target = $region29
    $region28: #{reticl_forward.1} parent=1 // pred_region
      _
    $region29: #{reticl_forward.1} parent=1 // pred_fallthru
      _
    // Predicated region
    $region30: #{reticl_forward.1} parent=1 // pred_check
      _
    $region31: #{reticl_forward.1} parent=1 // pred_check_branch
      %32 = sbr.rel (0) target = $region33
    $region32: #{reticl_forward.1} parent=1 // pred_region
      _
    $region33: #{reticl_forward.1} parent=1 // pred_fallthru
      _
    %p34 = scmp.eq.s32.totalorder 0, 0
    // Predicated region
    $region34: #{reticl_forward.1} parent=1 // pred_check
      %p35 = pneg %p34
    $region35: #{reticl_forward.1} parent=1 // pred_check_branch
      %37 = sbr.rel (%p35) target = $region37
    $region36: #{reticl_forward.1} parent=1 // pred_region
      %v38 = vld [vmem:[%s0] sm:$0xf]
      %v39 = vld [vmem:[%s0 + $0x4] sm:$0xf]
      %v40 = vld [vmem:[%s1] sm:$0xf]
      %v41 = vld [vmem:[%s1 + $0x4] sm:$0xf]
      %v42 = vld [vmem:[%s1 + $0x8] sm:$0xf]
      %v43 = vld [vmem:[%s1 + $0xc] sm:$0xf]
      %v46 = vunpack.c.l.b16 %v38
      %v47 = vunpack.c.l.b16 %v39
      %v48 = vpack.c.b16 %v47, %v46
      %v53 = vunpack.c.l.b16 %v40
      %v54 = vunpack.c.l.b16 %v41
      %v55 = vunpack.c.l.b16 %v42
      %v56 = vunpack.c.l.b16 %v43
      %v57 = vpack.c.b16 %v54, %v53
      %v58 = vpack.c.b16 %v56, %v55
      %vm61 = vcmask 261120
      %v63 = vsel %vm61, %v48, 0
      %65 = vmatprep.subr.bf16.mxu0 0
      %66 = vmatpush1.bf16.msra.mxu0 0
      %67 = vmatprep.subr.bf16.mxu0 0
      %68 = vmatpush1.bf16.msra.mxu0 0
      %69 = vmatprep.subr.bf16.mxu0 0
      %70 = vmatpush1.bf16.msra.mxu0 0
      %71 = vmatprep.subr.bf16.mxu0 0
      %72 = vmatpush1.bf16.msra.mxu0 0
      %73 = vmatprep.subr.bf16.mxu0 0
      %74 = vmatpush1.bf16.msra.mxu0 0
      %75 = vmatprep.subr.bf16.mxu0 0
      %76 = vmatpush1.bf16.msra.mxu0 0
      %77 = vmatprep.subr.bf16.mxu0 0
      %78 = vmatpush1.bf16.msra.mxu0 %v58
      %79 = vmatprep.subr.bf16.mxu0 0
      %80 = vmatpush1.bf16.msra.mxu0 %v57
      %81 = vmatprep.subr.bf16.mxu0 0
      %82 = vmatpush2.bf16.msra.mxu0 0
      %83 = vmatprep.subr.bf16.mxu0 0
      %84 = vmatpush2.bf16.msra.mxu0 0
      %85 = vmatprep.subr.bf16.mxu0 0
      %86 = vmatpush2.bf16.msra.mxu0 0
      %87 = vmatprep.subr.bf16.mxu0 0
      %88 = vmatpush2.bf16.msra.mxu0 0
      %89 = vmatprep.subr.bf16.mxu0 0
      %90 = vmatpush2.bf16.msra.mxu0 0
      %91 = vmatprep.subr.bf16.mxu0 0
      %92 = vmatpush2.bf16.msra.mxu0 0
      %93 = vmatprep.subr.bf16.mxu0 0
      %94 = vmatpush2.bf16.msra.mxu0 0
      %95 = vmatprep.subr.bf16.mxu0 0
      %96 = vmatpush2.bf16.msra.mxu0 0
      %97 = vmatprep.mubr.bf16.mxu0 0
      %98 = vmatmul.mubr.bf16.gmra.mxu0 %v63
      %v99 = vpop.f32.mrf.mxu0
      %v100 = vadd.f32 0.0, %v99
      %v101 = vpop.f32.mrf.mxu0
      %v102 = vpop.f32.mrf.mxu0
      %v103 = vadd.f32 0.0, %v102
      %v104 = vpop.f32.mrf.mxu0
      %105 = vdwg.mxu0
      %v106 = vpack.c.bf16 %v103, %v100
      %v108 = vunpack.c.l.b16 %v106
      %v109 = vunpack.c.h.b16 %v106
      %v110 = vpack.c.b16 %v108, %v108
      %v111 = vpack.c.b16 %v109, %v109
      %vm114 = vcmask 519168
      %115 = vst.msk [vmem:[#allocation2] sm:$0xf] %vm114, %v110
      %116 = vst.msk [vmem:[#allocation2 + $0x4] sm:$0xf] %vm114, %v111
      %v117 = vld [vmem:[%s3] sm:$0xf]
      %v118 = vld [vmem:[%s3 + $0x4] sm:$0xf]
      %v119 = vld [vmem:[%s3 + $0x8] sm:$0xf]
      %v120 = vld [vmem:[%s3 + $0xc] sm:$0xf]
      %v121 = vld [vmem:[%s4] sm:$0x1]
      %v123 = vlaneseq
      %v124 = vshrl.u32 %v123, 7
      %v125 = vsub.s32 0, %v124
      %v126 = vrot.slane %v121, %v125
      %v132 = vunpack.c.l.b16 %v117
      %v133 = vunpack.c.l.b16 %v118
      %v134 = vunpack.c.l.b16 %v119
      %v135 = vunpack.c.l.b16 %v120
      %v136 = vpack.c.b16 %v133, %v132
      %v137 = vpack.c.b16 %v135, %v134
      %140 = vmatprep.subr.bf16.mxu0 0
      %141 = vmatpush1.bf16.msra.mxu0 0
      %142 = vmatprep.subr.bf16.mxu0 0
      %143 = vmatpush1.bf16.msra.mxu0 0
      %144 = vmatprep.subr.bf16.mxu0 0
      %145 = vmatpush1.bf16.msra.mxu0 0
      %146 = vmatprep.subr.bf16.mxu0 0
      %147 = vmatpush1.bf16.msra.mxu0 0
      %148 = vmatprep.subr.bf16.mxu0 0
      %149 = vmatpush1.bf16.msra.mxu0 0
      %150 = vmatprep.subr.bf16.mxu0 0
      %151 = vmatpush1.bf16.msra.mxu0 0
      %152 = vmatprep.subr.bf16.mxu0 0
      %153 = vmatpush1.bf16.msra.mxu0 %v137
      %154 = vmatprep.subr.bf16.mxu0 0
      %155 = vmatpush1.bf16.msra.mxu0 %v136
      %156 = vmatprep.subr.bf16.mxu0 0
      %157 = vmatpush2.bf16.msra.mxu0 0
      %158 = vmatprep.subr.bf16.mxu0 0
      %159 = vmatpush2.bf16.msra.mxu0 0
      %160 = vmatprep.subr.bf16.mxu0 0
      %161 = vmatpush2.bf16.msra.mxu0 0
      %162 = vmatprep.subr.bf16.mxu0 0
      %163 = vmatpush2.bf16.msra.mxu0 0
      %164 = vmatprep.subr.bf16.mxu0 0
      %165 = vmatpush2.bf16.msra.mxu0 0
      %166 = vmatprep.subr.bf16.mxu0 0
      %167 = vmatpush2.bf16.msra.mxu0 0
      %168 = vmatprep.subr.bf16.mxu0 0
      %169 = vmatpush2.bf16.msra.mxu0 0
      %170 = vmatprep.subr.bf16.mxu0 0
      %171 = vmatpush2.bf16.msra.mxu0 0
      %172 = vmatprep.mubr.bf16.mxu0 0
      %173 = vmatmul.mubr.bf16.gmra.mxu0 %v63
      %v174 = vpop.f32.mrf.mxu0
      %v175 = vadd.f32 %v126, %v174
      %v176 = vpop.f32.mrf.mxu0
      %v177 = vpop.f32.mrf.mxu0
      %v178 = vadd.f32 %v126, %v177
      %v179 = vpop.f32.mrf.mxu0
      %180 = vdwg.mxu0
      %v181 = vld [vmem:[%s6] sm:$0xff]
      %v182 = vld [vmem:[%s6 + $0x8] sm:$0xff]
      %v183 = vadd.f32 %v175, %v181
      %v184 = vadd.f32 %v178, %v182
      %vm185 = vcmask 7168
      %186 = vst.msk [vmem:[#allocation3] sm:$0xff] %vm185, %v183
      %187 = vst.msk [vmem:[#allocation3 + $0x8] sm:$0xff] %vm185, %v184
      %190 = vrot.lane.b32.xlu0 %v175, 127
      %v191 = vpop.permute.xlu0 %190
      %192 = vrot.lane.b32.xlu0 %v178, 127
      %v193 = vpop.permute.xlu0 %192
      %196 = vst.msk [vmem:[%s9] sm:$0xff] %vm185, %v191
      %197 = vst.msk [vmem:[%s9 + $0x8] sm:$0xff] %vm185, %v193
    $region37: #{reticl_forward.1} parent=1 // pred_fallthru
      _
    %v198 = vld [vmem:[#allocation2] sm:$0xf]
    %v199 = vld [vmem:[#allocation2 + $0x4] sm:$0xf]
    %v200 = vld [vmem:[%s2] sm:$0xf]
    %v201 = vld [vmem:[%s2 + $0x4] sm:$0xf]
    %v202 = vld [vmem:[%s2 + $0x8] sm:$0xf]
    %v203 = vld [vmem:[%s2 + $0xc] sm:$0xf]
    %v204 = vld [vmem:[%s2 + $0x10] sm:$0xf]
    %v205 = vld [vmem:[%s2 + $0x14] sm:$0xf]
    %v206 = vld [vmem:[%s2 + $0x18] sm:$0xf]
    %v207 = vld [vmem:[%s2 + $0x1c] sm:$0xf]
    %s208 = sld [smem:[#allocation4]]
    %v209 = vstv %s208
    %v212 = vunpack.c.l.b16 %v198
    %v213 = vunpack.c.l.b16 %v199
    %v214 = vpack.c.b16 %v213, %v212
    %v223 = vunpack.c.l.b16 %v200
    %v224 = vunpack.c.l.b16 %v201
    %v225 = vunpack.c.l.b16 %v202
    %v226 = vunpack.c.l.b16 %v203
    %v227 = vunpack.c.l.b16 %v204
    %v228 = vunpack.c.l.b16 %v205
    %v229 = vunpack.c.l.b16 %v206
    %v230 = vunpack.c.l.b16 %v207
    %v231 = vpack.c.b16 %v224, %v223
    %v232 = vpack.c.b16 %v226, %v225
    %v233 = vpack.c.b16 %v228, %v227
    %v234 = vpack.c.b16 %v230, %v229
    %vm239 = vcmask 523264
    %v241 = vsel %vm239, %v214, 0
    %243 = vmatprep.subr.bf16.mxu0 0
    %244 = vmatpush1.bf16.msra.mxu0 0
    %245 = vmatprep.subr.bf16.mxu0 0
    %246 = vmatpush1.bf16.msra.mxu0 0
    %247 = vmatprep.subr.bf16.mxu0 0
    %248 = vmatpush1.bf16.msra.mxu0 0
    %249 = vmatprep.subr.bf16.mxu0 0
    %250 = vmatpush1.bf16.msra.mxu0 0
    %251 = vmatprep.subr.bf16.mxu0 0
    %252 = vmatpush1.bf16.msra.mxu0 %v234
    %253 = vmatprep.subr.bf16.mxu0 0
    %254 = vmatpush1.bf16.msra.mxu0 %v233
    %255 = vmatprep.subr.bf16.mxu0 0
    %256 = vmatpush1.bf16.msra.mxu0 %v232
    %257 = vmatprep.subr.bf16.mxu0 0
    %258 = vmatpush1.bf16.msra.mxu0 %v231
    %259 = vmatprep.subr.bf16.mxu0 0
    %260 = vmatpush2.bf16.msra.mxu0 0
    %261 = vmatprep.subr.bf16.mxu0 0
    %262 = vmatpush2.bf16.msra.mxu0 0
    %263 = vmatprep.subr.bf16.mxu0 0
    %264 = vmatpush2.bf16.msra.mxu0 0
    %265 = vmatprep.subr.bf16.mxu0 0
    %266 = vmatpush2.bf16.msra.mxu0 0
    %267 = vmatprep.subr.bf16.mxu0 0
    %268 = vmatpush2.bf16.msra.mxu0 0
    %269 = vmatprep.subr.bf16.mxu0 0
    %270 = vmatpush2.bf16.msra.mxu0 0
    %271 = vmatprep.subr.bf16.mxu0 0
    %272 = vmatpush2.bf16.msra.mxu0 0
    %273 = vmatprep.subr.bf16.mxu0 0
    %274 = vmatpush2.bf16.msra.mxu0 0
    %275 = vmatprep.mubr.bf16.mxu0 0
    %276 = vmatmul.mubr.bf16.gmra.mxu0 %v241
    %v277 = vpop.f32.mrf.mxu0
    %v278 = vadd.f32 %v209, %v277
    %v279 = vpop.f32.mrf.mxu0
    %v280 = vpop.f32.mrf.mxu0
    %v281 = vadd.f32 %v209, %v280
    %v282 = vpop.f32.mrf.mxu0
    %283 = vdwg.mxu0
    %v284 = vlaneseq
    %v285 = vand.u32 %v284, 127
    %s286 = smul.u32 0, 128
    %v287 = vstv %s286
    %v288 = vadd.s32 %v285, %v287
    %v289 = vld [vmem:[%s5] sm:$0xff]
    %v290 = vld [vmem:[%s5 + $0x8] sm:$0xff]
    %291 = vset.pattern.permute.xlu0 0
    %292 = vperm.xlu0 %291, %v289
    %v293 = vpop.permute.xlu0 %292
    %294 = vset.pattern.permute.xlu0 0
    %295 = vperm.xlu0 %294, %v290
    %v296 = vpop.permute.xlu0 %295
    %vm297 = vcmp.eq.s32.totalorder %v293, %v288
    %vm298 = vcmp.eq.s32.totalorder %v296, %v288
    %299 = vset.pattern.permute.xlu0 1
    %300 = vperm.xlu0 %299, %v289
    %v301 = vpop.permute.xlu0 %300
    %302 = vset.pattern.permute.xlu0 1
    %303 = vperm.xlu0 %302, %v290
    %v304 = vpop.permute.xlu0 %303
    %vm305 = vcmp.eq.s32.totalorder %v301, %v288
    %vm306 = vcmp.eq.s32.totalorder %v304, %v288
    %vm307 = vmor %vm297, %vm305
    %vm308 = vmor %vm298, %vm306
    %309 = vset.pattern.permute.xlu0 2
    %310 = vperm.xlu0 %309, %v289
    %v311 = vpop.permute.xlu0 %310
    %312 = vset.pattern.permute.xlu0 2
    %313 = vperm.xlu0 %312, %v290
    %v314 = vpop.permute.xlu0 %313
    %vm315 = vcmp.eq.s32.totalorder %v311, %v288
    %vm316 = vcmp.eq.s32.totalorder %v314, %v288
    %vm317 = vmor %vm307, %vm315
    %vm318 = vmor %vm308, %vm316
    %319 = vset.pattern.permute.xlu0 3
    %320 = vperm.xlu0 %319, %v289
    %v321 = vpop.permute.xlu0 %320
    %322 = vset.pattern.permute.xlu0 3
    %323 = vperm.xlu0 %322, %v290
    %v324 = vpop.permute.xlu0 %323
    %vm325 = vcmp.eq.s32.totalorder %v321, %v288
    %vm326 = vcmp.eq.s32.totalorder %v324, %v288
    %vm327 = vmor %vm317, %vm325
    %vm328 = vmor %vm318, %vm326
    %329 = vset.pattern.permute.xlu0 4
    %330 = vperm.xlu0 %329, %v289
    %v331 = vpop.permute.xlu0 %330
    %332 = vset.pattern.permute.xlu0 4
    %333 = vperm.xlu0 %332, %v290
    %v334 = vpop.permute.xlu0 %333
    %vm335 = vcmp.eq.s32.totalorder %v331, %v288
    %vm336 = vcmp.eq.s32.totalorder %v334, %v288
    %vm337 = vmor %vm327, %vm335
    %vm338 = vmor %vm328, %vm336
    %339 = vset.pattern.permute.xlu0 5
    %340 = vperm.xlu0 %339, %v289
    %v341 = vpop.permute.xlu0 %340
    %342 = vset.pattern.permute.xlu0 5
    %343 = vperm.xlu0 %342, %v290
    %v344 = vpop.permute.xlu0 %343
    %vm345 = vcmp.eq.s32.totalorder %v341, %v288
    %vm346 = vcmp.eq.s32.totalorder %v344, %v288
    %vm347 = vmor %vm337, %vm345
    %vm348 = vmor %vm338, %vm346
    %349 = vset.pattern.permute.xlu0 6
    %350 = vperm.xlu0 %349, %v289
    %v351 = vpop.permute.xlu0 %350
    %352 = vset.pattern.permute.xlu0 6
    %353 = vperm.xlu0 %352, %v290
    %v354 = vpop.permute.xlu0 %353
    %vm355 = vcmp.eq.s32.totalorder %v351, %v288
    %vm356 = vcmp.eq.s32.totalorder %v354, %v288
    %vm357 = vmor %vm347, %vm355
    %vm358 = vmor %vm348, %vm356
    %359 = vset.pattern.permute.xlu0 7
    %360 = vperm.xlu0 %359, %v289
    %v361 = vpop.permute.xlu0 %360
    %362 = vset.pattern.permute.xlu0 7
    %363 = vperm.xlu0 %362, %v290
    %v364 = vpop.permute.xlu0 %363
    %vm365 = vcmp.eq.s32.totalorder %v361, %v288
    %vm366 = vcmp.eq.s32.totalorder %v364, %v288
    %vm367 = vmor %vm357, %vm365
    %vm368 = vmor %vm358, %vm366
    %v369 = vsel %vm367, -inf, %v278
    %v370 = vsel %vm368, -inf, %v281
    %vm371 = vcmp.eq.s32.totalorder %v288, 16
    %v372 = vld [vmem:[#allocation3] sm:$0xff]
    %v373 = vld [vmem:[#allocation3 + $0x8] sm:$0xff]
    %375 = vset.pattern.permute.xlu0 0
    %376 = vperm.xlu0 %375, %v372
    %v377 = vpop.permute.xlu0 %376
    %380 = vset.pattern.permute.xlu0 0
    %381 = vperm.xlu0 %380, %v373
    %v382 = vpop.permute.xlu0 %381
    %v384 = vsel %vm371, %v377, %v369
    %v385 = vsel %vm371, %v382, %v370
    %386 = vst [vmem:[#allocation5] sm:$0xff] %v384
    %387 = vst [vmem:[#allocation5 + $0x8] sm:$0xff] %v385
    // Predicated region
    $region38: #{reticl_forward.1} parent=1 // pred_check
      _
    $region39: #{reticl_forward.1} parent=1 // pred_check_branch
      %389 = sbr.rel (0) target = $region41
    $region40: #{reticl_forward.1} parent=1 // pred_region
      %s391 = ssub.s32 256, 256
      %392 = vsyncadd [#allocation6], %s391
      %s393 = sshll.u32 [#allocation5], 4
      %s394 = int_to_ptr.vmem [resolvable:$true] %s393
      %399 = dma.vmem_to_hbm [thread:$0]  %s394, 256, %s8, [#allocation6], 128, 128, 8
    $region41: #{reticl_forward.1} parent=1 // pred_fallthru
      _
    // Predicated region
    $region42: #{reticl_forward.1} parent=1 // pred_check
      _
    $region43: #{reticl_forward.1} parent=1 // pred_check_branch
      %401 = sbr.rel (0) target = $region45
    $region44: #{reticl_forward.1} parent=1 // pred_region
      _
    $region45: #{reticl_forward.1} parent=1 // pred_fallthru
      _
    // Predicated region
    $region46: #{reticl_forward.1} parent=1 // pred_check
      _
    $region47: #{reticl_forward.1} parent=1 // pred_check_branch
      %403 = sbr.rel (0) target = $region49
    $region48: #{reticl_forward.1} parent=1 // pred_region
      %404 = dma.done [#allocation6], 256
    $region49: #{reticl_forward.1} parent=1 // pred_fallthru
      _
    // Predicated region
    $region50: #{reticl_forward.1} parent=1 // pred_check
      _
    $region51: #{reticl_forward.1} parent=1 // pred_check_branch
      %406 = sbr.rel (0) target = $region53
    $region52: #{reticl_forward.1} parent=1 // pred_region
      _
    $region53: #{reticl_forward.1} parent=1 // pred_fallthru
      _
    %407 = vsyncpa [#allocation6], 1

</llo_original>
